<compile_context>
chip_gen: v6e
topology: v6e:2x2x1
jax: 0.10.0
libtpu: 0.0.40
codegen_flags: <defaults>
</compile_context>

<pallas_src>
import functools
import math

import jax
import jax.numpy as jnp
from jax.experimental import pallas as pl
from jax.experimental.pallas import tpu as pltpu

NUM_HEADS = 2
LN_EPS = 1e-5
MASK_NEG = -1e30


# ---------------------------------------------------------------------------
# Packed per-layer weight layout: every weight/bias/LN tensor of one layer
# lives in a single (ROWS, LANE) f32 slab (lane dim zero-padded to >=128), so
# each grid step issues ONE weight DMA instead of 12.  Row offsets are static
# Python ints -> all in-kernel slicing is static.
# ---------------------------------------------------------------------------
def _weight_layout(emb_dim, hid_dim):
    E, H = emb_dim, hid_dim
    specs = [
        ("wqkv", E, 3 * E),    # fused in-projection (E, 3E)
        ("wo",   E, E),        # attention output projection
        ("w1",   E, H),        # FFN Linear_1
        ("w2",   H, E),        # FFN Linear_2
        ("bqkv", 1, 3 * E),
        ("bo",   1, E),
        ("ln1w", 1, E), ("ln1b", 1, E),
        ("b1",   1, H),
        ("b2",   1, E),
        ("ln2w", 1, E), ("ln2b", 1, E),
    ]
    layout, row = {}, 0
    for name, nr, nc in specs:
        layout[name] = (row, nr, nc)
        row += nr
    lane = max(128, ((max(3 * E, H) + 127) // 128) * 128)
    return layout, row, lane          # row == 3E + H + 8


def pack_layer_weights(layer_params, emb_dim, hid_dim):
    layout, rows, lane = _weight_layout(emb_dim, hid_dim)
    buf = jnp.zeros((len(layer_params), rows, lane), jnp.float32)
    for li, lp in enumerate(layer_params):
        for name, (off, nr, nc) in layout.items():
            buf = buf.at[li, off:off + nr, 0:nc].set(
                jnp.asarray(lp[name], jnp.float32).reshape(nr, nc))
    return buf


# ---------------------------------------------------------------------------
# Fused encoder kernel: one grid step == one layer on one batch tile.
# ---------------------------------------------------------------------------
def _encoder_layer_kernel(x_ref, mask_ref, w_ref, o_ref, *, layout, n_heads,
                          compute_dtype):
    """x_ref   : (M, E) embedded+PE activations (only read at layer 0)
       mask_ref: (nb, 1, L) additive key-padding mask (0 / -1e30)
       w_ref   : (1, ROWS, LANE) packed per-layer weights (single DMA)
       o_ref   : (M, E) output block == VMEM-resident running activations."""
    layer = pl.program_id(1)
    f32 = jnp.float32
    cdt = compute_dtype

    @pl.when(layer == 0)
    def _():
        o_ref[...] = x_ref[...]

    nb, _, L = mask_ref.shape
    M, E = o_ref.shape
    hd = E // n_heads
    scale = 1.0 / math.sqrt(hd)

    P = w_ref[0]                                     # (ROWS, LANE)

    def W(name):
        off, nr, nc = layout[name]
        return P[off:off + nr, 0:nc]

    x = o_ref[...]                                   # (M, E) resident activations
    mask = mask_ref[...]                             # (nb, 1, L)

    # ---- multi-head self attention (nn.MultiheadAttention semantics) ----
    # fused QKV projection: one (M, E) @ (E, 3E) matmul
    qkv = jnp.dot(x.astype(cdt), W("wqkv").astype(cdt),
                  preferred_element_type=f32) + W("bqkv")            # (M, 3E)

    wo = W("wo")                                                     # (E, E)
    attn = W("bo")                                                   # (1, E), broadcasts
    for h in range(n_heads):                                         # static unroll (2)
        qh = (qkv[:, h * hd:(h + 1) * hd] * scale).reshape(nb, L, hd)
        kh = qkv[:, E + h * hd: E + (h + 1) * hd].reshape(nb, L, hd)
        vh = qkv[:, 2 * E + h * hd: 2 * E + (h + 1) * hd].reshape(nb, L, hd)
        s = jnp.einsum('nqd,nkd->nqk', qh.astype(cdt), kh.astype(cdt),
                       preferred_element_type=f32)                   # (nb, L, L)
        s = s + mask
        s = s - jnp.max(s, axis=-1, keepdims=True)
        p = jnp.exp(s)
        p = p * pl.reciprocal(jnp.sum(p, axis=-1, keepdims=True), approx=True)
        ctx = jnp.einsum('nqk,nkd->nqd', p.astype(cdt), vh.astype(cdt),
                         preferred_element_type=f32)                 # (nb, L, hd)
        # fold the per-head output projection (row slice of W_o, no concat):
        attn = attn + jnp.dot(ctx.reshape(M, hd).astype(cdt),
                              wo[h * hd:(h + 1) * hd, :].astype(cdt),
                              preferred_element_type=f32)

    def layer_norm(y, w, b):
        mu = jnp.mean(y, axis=-1, keepdims=True)
        var = jnp.mean(y * y, axis=-1, keepdims=True) - mu * mu      # one-pass
        return (y - mu) * jax.lax.rsqrt(var + LN_EPS) * w + b

    # add & norm 1
    t = layer_norm(attn + x, W("ln1w"), W("ln1b"))                   # (M, E)

    # feed-forward: Linear_1 -> ReLU -> Linear_2
    h1 = jnp.dot(t.astype(cdt), W("w1").astype(cdt),
                 preferred_element_type=f32) + W("b1")
    h1 = jnp.maximum(h1, 0.0)
    h2 = jnp.dot(h1.astype(cdt), W("w2").astype(cdt),
                 preferred_element_type=f32) + W("b2")

    # add & norm 2 -> stays resident (and is the output of the last layer)
    o_ref[...] = layer_norm(h2 + t, W("ln2w"), W("ln2b"))


# ---------------------------------------------------------------------------
# Wrapper
# ---------------------------------------------------------------------------
def encoder_forward(src, src_mask, params, compute_dtype=jnp.float32):
    """src: (L, N) int32 tokens.  src_mask: (N, L) bool key_padding_mask.
    Returns (L, N, E) float32, matching Encoder.forward output layout.
    Use compute_dtype=jnp.bfloat16 on v6e/v7x for MXU-peak matmuls
    (f32 accumulation; verify tolerance vs the fp32 reference)."""
    emb = jnp.take(params["embedding"], src, axis=0)                 # (L, N, E)
    L, N, E = emb.shape

    # faithful reproduction of pe[:, :x.size(1)] (batch-dim slice of pe)
    x = (emb + params["pe"][:N][None, :, :]).astype(jnp.float32)     # (L, N, E)
    # dropout_1: identity (eval mode)
    x2 = jnp.transpose(x, (1, 0, 2)).reshape(N * L, E)               # batch-major slab

    # bool key_padding_mask -> additive float mask
    add_mask = jnp.where(src_mask, MASK_NEG, 0.0).astype(jnp.float32).reshape(N, 1, L)

    packed = params["wpacked"]                                       # (n_layers, R, lane)
    n_layers, rows, lane = packed.shape
    H = rows - 3 * E - 8                                             # layout: 3E + H + 8 rows
    layout, rows2, lane2 = _weight_layout(E, H)
    assert (rows2, lane2) == (rows, lane)

    # Batch-tile the slab so v7x's two TensorCores split the work ("parallel"
    # axis); attention only mixes within a batch element so this is safe.
    # Fall back to one tile if the row tile would not stay sublane-aligned.
    n_batch_tiles = 2 if (N % 2 == 0 and ((N // 2) * L) % 8 == 0) else 1
    nb = N // n_batch_tiles
    tile_rows = nb * L

    kernel = functools.partial(_encoder_layer_kernel, layout=layout,
                               n_heads=NUM_HEADS, compute_dtype=compute_dtype)

    out = pl.pallas_call(
        kernel,
        out_shape=jax.ShapeDtypeStruct((N * L, E), jnp.float32),
        grid_spec=pltpu.PrefetchScalarGridSpec(
            num_scalar_prefetch=0,
            grid=(n_batch_tiles, n_layers),
            in_specs=[
                pl.BlockSpec((tile_rows, E), lambda b, l: (b, 0)),
                pl.BlockSpec((nb, 1, L), lambda b, l: (b, 0, 0)),
                pl.BlockSpec((1, rows, lane), lambda b, l: (l, 0, 0)),
            ],
            out_specs=pl.BlockSpec((tile_rows, E), lambda b, l: (b, 0)),
        ),
        compiler_params=pltpu.CompilerParams(
            dimension_semantics=("parallel", "arbitrary")),          # layers sequential
    )(x2, add_mask, packed)

    return jnp.transpose(out.reshape(N, L, E), (1, 0, 2))            # back to (L, N, E)


# ---------------------------------------------------------------------------
# Deterministic parameter init (shapes follow Encoder.__init__)
# ---------------------------------------------------------------------------
def make_positional_encoding(max_len, d_model):
    position = jnp.arange(max_len, dtype=jnp.float32)[:, None]
    div_term = jnp.exp(jnp.arange(0, d_model, 2, dtype=jnp.float32)
                       * (-math.log(10000.0) / d_model))
    pe = jnp.zeros((max_len, d_model), dtype=jnp.float32)
    pe = pe.at[:, 0::2].set(jnp.sin(position * div_term))
    pe = pe.at[:, 1::2].set(jnp.cos(position * div_term))
    return pe


def init_params(key, input_dim, emb_dim, hid_dim, n_layers, max_len=128):
    E, H = emb_dim, hid_dim
    keys = jax.random.split(key, 1 + n_layers)
    layers = []
    for i in range(n_layers):
        ks = jax.random.split(keys[1 + i], 8)
        in_proj_w = 0.05 * jax.random.normal(ks[0], (3 * E, E), jnp.float32)
        in_proj_b = 0.01 * jax.random.normal(ks[1], (3 * E,), jnp.float32)
        out_proj_w = 0.05 * jax.random.normal(ks[2], (E, E), jnp.float32)
        out_proj_b = jnp.zeros((E,), jnp.float32)
        w1 = 0.05 * jax.random.normal(ks[3], (H, E), jnp.float32)    # nn.Linear(E->H)
        b1 = 0.01 * jax.random.normal(ks[4], (H,), jnp.float32)
        w2 = 0.05 * jax.random.normal(ks[5], (E, H), jnp.float32)    # nn.Linear(H->E)
        b2 = 0.01 * jax.random.normal(ks[6], (E,), jnp.float32)
        layers.append(dict(
            # in_proj rows are [Wq; Wk; Wv]; transpose -> fused (E, 3E) weight
            # so a single x @ Wqkv reproduces q|k|v.
            wqkv=in_proj_w.T, bqkv=in_proj_b,
            wo=out_proj_w.T, bo=out_proj_b,
            ln1w=jnp.ones((E,), jnp.float32), ln1b=jnp.zeros((E,), jnp.float32),
            w1=w1.T, b1=b1,
            w2=w2.T, b2=b2,
            ln2w=jnp.ones((E,), jnp.float32), ln2b=jnp.zeros((E,), jnp.float32)))
    return {
        "embedding": 0.02 * jax.random.normal(keys[0], (input_dim, E), jnp.float32),
        "pe": make_positional_encoding(max_len, E),
        "wpacked": pack_layer_weights(layers, E, H),
    }


# ---------------------------------------------------------------------------
if __name__ == "__main__":
    key = jax.random.PRNGKey(0)
    L, N = 8, 2                       # seq_len, batch
    emb_dim, hid_dim = 32, 64
    n_layers, input_dim = 2, 50

    k_params, k_src = jax.random.split(key)
    params = init_params(k_params, input_dim, emb_dim, hid_dim, n_layers)

    src = jax.random.randint(k_src, (L, N), 0, input_dim, dtype=jnp.int32)   # (L, N)
    src_mask = jnp.zeros((N, L), dtype=bool).at[:, L - 2:].set(True)         # pad last 2

    fwd = jax.jit(encoder_forward)
    out = fwd(src, src_mask, params)                  # (L, N, E)
    jax.block_until_ready(out)
    assert out.shape == (L, N, emb_dim) and out.dtype == jnp.float32
    print("KERNEL_OK")
</pallas_src>

<mosaic_0001>
module attributes {stable_mosaic.version = 11 : i64} {
  func.func @_encoder_layer_kernel(%arg0: i32, %arg1: i32, %arg2: memref<8x32xf32, #tpu.memory_space<vmem>>, %arg3: memref<1x1x8xf32, #tpu.memory_space<vmem>>, %arg4: memref<1x168x128xf32, #tpu.memory_space<vmem>>, %arg5: memref<8x32xf32, #tpu.memory_space<vmem>>) attributes {dimension_semantics = [#tpu.dimension_semantics<parallel>, #tpu.dimension_semantics<arbitrary>], iteration_bounds = array<i64: 2, 2>, scalar_prefetch = 0 : i64, scratch_operands = 0 : i64, tpu.core_type = #tpu.core_type<tc>, window_params = [{transform_indices = @transform_0, window_bounds = array<i64: 8, 32>}, {transform_indices = @transform_1, window_bounds = array<i64: 1, 1, 8>}, {transform_indices = @transform_2, window_bounds = array<i64: 1, 168, 128>}, {transform_indices = @transform_3, window_bounds = array<i64: 8, 32>}]} {
    %c0_i32 = arith.constant 0 : i32
    %0 = arith.cmpi eq, %arg1, %c0_i32 : i32
    %1 = arith.extui %0 : i1 to i32
    %c0_i32_0 = arith.constant 0 : i32
    %2 = arith.cmpi ne, %1, %c0_i32_0 : i32
    scf.if %2 {
      %c0_35 = arith.constant 0 : index
      %c0_36 = arith.constant 0 : index
      %130 = vector.load %arg2[%c0_35, %c0_36] : memref<8x32xf32, #tpu.memory_space<vmem>>, vector<8x32xf32>
      %c0_37 = arith.constant 0 : index
      %c0_38 = arith.constant 0 : index
      %131 = vector.load %arg5[%c0_37, %c0_38] : memref<8x32xf32, #tpu.memory_space<vmem>>, vector<8x32xf32>
      tpu.vector_store %arg5[%c0_37, %c0_38], %130 {strides = array<i32>} : memref<8x32xf32, #tpu.memory_space<vmem>>, vector<8x32xf32>,
    } else {
    }
    %c0 = arith.constant 0 : index
    %c0_1 = arith.constant 0 : index
    %c0_2 = arith.constant 0 : index
    %3 = vector.load %arg4[%c0, %c0_1, %c0_2] : memref<1x168x128xf32, #tpu.memory_space<vmem>>, vector<1x168x128xf32>
    %4 = vector.shape_cast %3 : vector<1x168x128xf32> to vector<168x128xf32>
    %c0_3 = arith.constant 0 : index
    %c0_4 = arith.constant 0 : index
    %5 = vector.load %arg5[%c0_3, %c0_4] : memref<8x32xf32, #tpu.memory_space<vmem>>, vector<8x32xf32>
    %c0_5 = arith.constant 0 : index
    %c0_6 = arith.constant 0 : index
    %c0_7 = arith.constant 0 : index
    %6 = vector.load %arg3[%c0_5, %c0_6, %c0_7] : memref<1x1x8xf32, #tpu.memory_space<vmem>>, vector<1x1x8xf32>
    %7 = vector.extract_strided_slice %4 {offsets = [0, 0], sizes = [32, 96], strides = [1, 1]} : vector<168x128xf32> to vector<32x96xf32>
    %cst = arith.constant dense<0.000000e+00> : vector<8x96xf32>
    %8 = tpu.matmul %5, %7, %cst {dimension_numbers = #tpu.dot_dimension_numbers<[1], [0], [0], [1], [0, 0, 1, 1], [], []>} : vector<8x32xf32>, vector<32x96xf32>, vector<8x96xf32> -> vector<8x96xf32>
    %9 = vector.extract_strided_slice %4 {offsets = [160, 0], sizes = [1, 96], strides = [1, 1]} : vector<168x128xf32> to vector<1x96xf32>
    %10 = vector.broadcast %9 : vector<1x96xf32> to vector<8x96xf32>
    %11 = arith.addf %8, %10 : vector<8x96xf32>
    %12 = vector.extract_strided_slice %4 {offsets = [32, 0], sizes = [32, 32], strides = [1, 1]} : vector<168x128xf32> to vector<32x32xf32>
    %13 = vector.extract_strided_slice %4 {offsets = [161, 0], sizes = [1, 32], strides = [1, 1]} : vector<168x128xf32> to vector<1x32xf32>
    %14 = vector.extract_strided_slice %11 {offsets = [0, 0], sizes = [8, 16], strides = [1, 1]} : vector<8x96xf32> to vector<8x16xf32>
    %cst_8 = arith.constant 2.500000e-01 : f32
    %15 = vector.broadcast %cst_8 : f32 to vector<8x16xf32>
    %16 = arith.mulf %14, %15 : vector<8x16xf32>
    %17 = vector.shape_cast %16 : vector<8x16xf32> to vector<1x8x16xf32>
    %18 = vector.extract_strided_slice %11 {offsets = [0, 32], sizes = [8, 16], strides = [1, 1]} : vector<8x96xf32> to vector<8x16xf32>
    %19 = vector.shape_cast %18 : vector<8x16xf32> to vector<1x8x16xf32>
    %20 = vector.extract_strided_slice %11 {offsets = [0, 64], sizes = [8, 16], strides = [1, 1]} : vector<8x96xf32> to vector<8x16xf32>
    %21 = vector.shape_cast %20 : vector<8x16xf32> to vector<1x8x16xf32>
    "tpu.trace_start"() <{level = 10 : i32, message = "nqd,nkd->nqk"}> : () -> ()
    %cst_9 = arith.constant dense<0.000000e+00> : vector<1x8x8xf32>
    %22 = tpu.matmul %17, %19, %cst_9 {dimension_numbers = #tpu.dot_dimension_numbers<[2], [2], [1], [1], [0, 0, 0, 1, 1, 1], [0], [0]>} : vector<1x8x16xf32>, vector<1x8x16xf32>, vector<1x8x8xf32> -> vector<1x8x8xf32>
    "tpu.trace_stop"() : () -> ()
    %23 = vector.broadcast %6 : vector<1x1x8xf32> to vector<1x8x8xf32>
    %24 = arith.addf %22, %23 : vector<1x8x8xf32>
    %cst_10 = arith.constant dense<0xFF800000> : vector<1x8xf32>
    %25 = vector.multi_reduction <maximumf>, %24, %cst_10 [2] : vector<1x8x8xf32> to vector<1x8xf32>
    %26 = vector.shape_cast %25 : vector<1x8xf32> to vector<1x8x1xf32>
    %27 = vector.broadcast %26 : vector<1x8x1xf32> to vector<1x8x8xf32>
    %28 = arith.subf %24, %27 : vector<1x8x8xf32>
    %29 = math.exp %28 : vector<1x8x8xf32>
    %cst_11 = arith.constant dense<0.000000e+00> : vector<1x8xf32>
    %30 = vector.multi_reduction <add>, %29, %cst_11 [2] : vector<1x8x8xf32> to vector<1x8xf32>
    %31 = vector.shape_cast %30 : vector<1x8xf32> to vector<1x8x1xf32>
    %32 = tpu.reciprocal %31 {approx = true} : vector<1x8x1xf32> -> vector<1x8x1xf32>
    %33 = vector.broadcast %32 : vector<1x8x1xf32> to vector<1x8x8xf32>
    %34 = arith.mulf %29, %33 : vector<1x8x8xf32>
    "tpu.trace_start"() <{level = 10 : i32, message = "nqk,nkd->nqd"}> : () -> ()
    %cst_12 = arith.constant dense<0.000000e+00> : vector<1x8x16xf32>
    %35 = tpu.matmul %34, %21, %cst_12 {dimension_numbers = #tpu.dot_dimension_numbers<[2], [1], [1], [2], [0, 0, 0, 1, 1, 2], [0], [0]>} : vector<1x8x8xf32>, vector<1x8x16xf32>, vector<1x8x16xf32> -> vector<1x8x16xf32>
    "tpu.trace_stop"() : () -> ()
    %36 = vector.shape_cast %35 : vector<1x8x16xf32> to vector<8x16xf32>
    %37 = vector.extract_strided_slice %12 {offsets = [0, 0], sizes = [16, 32], strides = [1, 1]} : vector<32x32xf32> to vector<16x32xf32>
    %cst_13 = arith.constant dense<0.000000e+00> : vector<8x32xf32>
    %38 = tpu.matmul %36, %37, %cst_13 {dimension_numbers = #tpu.dot_dimension_numbers<[1], [0], [0], [1], [0, 0, 1, 1], [], []>} : vector<8x16xf32>, vector<16x32xf32>, vector<8x32xf32> -> vector<8x32xf32>
    %39 = vector.broadcast %13 : vector<1x32xf32> to vector<8x32xf32>
    %40 = arith.addf %39, %38 : vector<8x32xf32>
    %41 = vector.extract_strided_slice %11 {offsets = [0, 16], sizes = [8, 16], strides = [1, 1]} : vector<8x96xf32> to vector<8x16xf32>
    %cst_14 = arith.constant 2.500000e-01 : f32
    %42 = vector.broadcast %cst_14 : f32 to vector<8x16xf32>
    %43 = arith.mulf %41, %42 : vector<8x16xf32>
    %44 = vector.shape_cast %43 : vector<8x16xf32> to vector<1x8x16xf32>
    %45 = vector.extract_strided_slice %11 {offsets = [0, 48], sizes = [8, 16], strides = [1, 1]} : vector<8x96xf32> to vector<8x16xf32>
    %46 = vector.shape_cast %45 : vector<8x16xf32> to vector<1x8x16xf32>
    %47 = vector.extract_strided_slice %11 {offsets = [0, 80], sizes = [8, 16], strides = [1, 1]} : vector<8x96xf32> to vector<8x16xf32>
    %48 = vector.shape_cast %47 : vector<8x16xf32> to vector<1x8x16xf32>
    "tpu.trace_start"() <{level = 10 : i32, message = "nqd,nkd->nqk"}> : () -> ()
    %cst_15 = arith.constant dense<0.000000e+00> : vector<1x8x8xf32>
    %49 = tpu.matmul %44, %46, %cst_15 {dimension_numbers = #tpu.dot_dimension_numbers<[2], [2], [1], [1], [0, 0, 0, 1, 1, 1], [0], [0]>} : vector<1x8x16xf32>, vector<1x8x16xf32>, vector<1x8x8xf32> -> vector<1x8x8xf32>
    "tpu.trace_stop"() : () -> ()
    %50 = vector.broadcast %6 : vector<1x1x8xf32> to vector<1x8x8xf32>
    %51 = arith.addf %49, %50 : vector<1x8x8xf32>
    %cst_16 = arith.constant dense<0xFF800000> : vector<1x8xf32>
    %52 = vector.multi_reduction <maximumf>, %51, %cst_16 [2] : vector<1x8x8xf32> to vector<1x8xf32>
    %53 = vector.shape_cast %52 : vector<1x8xf32> to vector<1x8x1xf32>
    %54 = vector.broadcast %53 : vector<1x8x1xf32> to vector<1x8x8xf32>
    %55 = arith.subf %51, %54 : vector<1x8x8xf32>
    %56 = math.exp %55 : vector<1x8x8xf32>
    %cst_17 = arith.constant dense<0.000000e+00> : vector<1x8xf32>
    %57 = vector.multi_reduction <add>, %56, %cst_17 [2] : vector<1x8x8xf32> to vector<1x8xf32>
    %58 = vector.shape_cast %57 : vector<1x8xf32> to vector<1x8x1xf32>
    %59 = tpu.reciprocal %58 {approx = true} : vector<1x8x1xf32> -> vector<1x8x1xf32>
    %60 = vector.broadcast %59 : vector<1x8x1xf32> to vector<1x8x8xf32>
    %61 = arith.mulf %56, %60 : vector<1x8x8xf32>
    "tpu.trace_start"() <{level = 10 : i32, message = "nqk,nkd->nqd"}> : () -> ()
    %cst_18 = arith.constant dense<0.000000e+00> : vector<1x8x16xf32>
    %62 = tpu.matmul %61, %48, %cst_18 {dimension_numbers = #tpu.dot_dimension_numbers<[2], [1], [1], [2], [0, 0, 0, 1, 1, 2], [0], [0]>} : vector<1x8x8xf32>, vector<1x8x16xf32>, vector<1x8x16xf32> -> vector<1x8x16xf32>
    "tpu.trace_stop"() : () -> ()
    %63 = vector.shape_cast %62 : vector<1x8x16xf32> to vector<8x16xf32>
    %64 = vector.extract_strided_slice %12 {offsets = [16, 0], sizes = [16, 32], strides = [1, 1]} : vector<32x32xf32> to vector<16x32xf32>
    %cst_19 = arith.constant dense<0.000000e+00> : vector<8x32xf32>
    %65 = tpu.matmul %63, %64, %cst_19 {dimension_numbers = #tpu.dot_dimension_numbers<[1], [0], [0], [1], [0, 0, 1, 1], [], []>} : vector<8x16xf32>, vector<16x32xf32>, vector<8x32xf32> -> vector<8x32xf32>
    %66 = arith.addf %40, %65 : vector<8x32xf32>
    %67 = arith.addf %66, %5 : vector<8x32xf32>
    %68 = vector.extract_strided_slice %4 {offsets = [162, 0], sizes = [1, 32], strides = [1, 1]} : vector<168x128xf32> to vector<1x32xf32>
    %69 = vector.extract_strided_slice %4 {offsets = [163, 0], sizes = [1, 32], strides = [1, 1]} : vector<168x128xf32> to vector<1x32xf32>
    %cst_20 = arith.constant dense<0.000000e+00> : vector<8xf32>
    %70 = vector.multi_reduction <add>, %67, %cst_20 [1] : vector<8x32xf32> to vector<8xf32>
    %71 = vector.shape_cast %70 : vector<8xf32> to vector<8x1xf32>
    %cst_21 = arith.constant 3.200000e+01 : f32
    %72 = vector.broadcast %cst_21 : f32 to vector<8x1xf32>
    %73 = arith.divf %71, %72 : vector<8x1xf32>
    %74 = arith.mulf %67, %67 : vector<8x32xf32>
    %cst_22 = arith.constant dense<0.000000e+00> : vector<8xf32>
    %75 = vector.multi_reduction <add>, %74, %cst_22 [1] : vector<8x32xf32> to vector<8xf32>
    %76 = vector.shape_cast %75 : vector<8xf32> to vector<8x1xf32>
    %cst_23 = arith.constant 3.200000e+01 : f32
    %77 = vector.broadcast %cst_23 : f32 to vector<8x1xf32>
    %78 = arith.divf %76, %77 : vector<8x1xf32>
    %79 = arith.mulf %73, %73 : vector<8x1xf32>
    %80 = arith.subf %78, %79 : vector<8x1xf32>
    %81 = vector.broadcast %73 : vector<8x1xf32> to vector<8x32xf32>
    %82 = arith.subf %67, %81 : vector<8x32xf32>
    %cst_24 = arith.constant 9.99999974E-6 : f32
    %83 = vector.broadcast %cst_24 : f32 to vector<8x1xf32>
    %84 = arith.addf %80, %83 : vector<8x1xf32>
    %85 = math.rsqrt %84 : vector<8x1xf32>
    %86 = vector.broadcast %85 : vector<8x1xf32> to vector<8x32xf32>
    %87 = arith.mulf %82, %86 : vector<8x32xf32>
    %88 = vector.broadcast %68 : vector<1x32xf32> to vector<8x32xf32>
    %89 = arith.mulf %87, %88 : vector<8x32xf32>
    %90 = vector.broadcast %69 : vector<1x32xf32> to vector<8x32xf32>
    %91 = arith.addf %89, %90 : vector<8x32xf32>
    %92 = vector.extract_strided_slice %4 {offsets = [64, 0], sizes = [32, 64], strides = [1, 1]} : vector<168x128xf32> to vector<32x64xf32>
    %cst_25 = arith.constant dense<0.000000e+00> : vector<8x64xf32>
    %93 = tpu.matmul %91, %92, %cst_25 {dimension_numbers = #tpu.dot_dimension_numbers<[1], [0], [0], [1], [0, 0, 1, 1], [], []>} : vector<8x32xf32>, vector<32x64xf32>, vector<8x64xf32> -> vector<8x64xf32>
    %94 = vector.extract_strided_slice %4 {offsets = [164, 0], sizes = [1, 64], strides = [1, 1]} : vector<168x128xf32> to vector<1x64xf32>
    %95 = vector.broadcast %94 : vector<1x64xf32> to vector<8x64xf32>
    %96 = arith.addf %93, %95 : vector<8x64xf32>
    %cst_26 = arith.constant 0.000000e+00 : f32
    %97 = vector.broadcast %cst_26 : f32 to vector<8x64xf32>
    %98 = arith.maximumf %96, %97 : vector<8x64xf32>
    %99 = vector.extract_strided_slice %4 {offsets = [96, 0], sizes = [64, 32], strides = [1, 1]} : vector<168x128xf32> to vector<64x32xf32>
    %cst_27 = arith.constant dense<0.000000e+00> : vector<8x32xf32>
    %100 = tpu.matmul %98, %99, %cst_27 {dimension_numbers = #tpu.dot_dimension_numbers<[1], [0], [0], [1], [0, 0, 1, 1], [], []>} : vector<8x64xf32>, vector<64x32xf32>, vector<8x32xf32> -> vector<8x32xf32>
    %101 = vector.extract_strided_slice %4 {offsets = [165, 0], sizes = [1, 32], strides = [1, 1]} : vector<168x128xf32> to vector<1x32xf32>
    %102 = vector.broadcast %101 : vector<1x32xf32> to vector<8x32xf32>
    %103 = arith.addf %100, %102 : vector<8x32xf32>
    %104 = arith.addf %103, %91 : vector<8x32xf32>
    %105 = vector.extract_strided_slice %4 {offsets = [166, 0], sizes = [1, 32], strides = [1, 1]} : vector<168x128xf32> to vector<1x32xf32>
    %106 = vector.extract_strided_slice %4 {offsets = [167, 0], sizes = [1, 32], strides = [1, 1]} : vector<168x128xf32> to vector<1x32xf32>
    %cst_28 = arith.constant dense<0.000000e+00> : vector<8xf32>
    %107 = vector.multi_reduction <add>, %104, %cst_28 [1] : vector<8x32xf32> to vector<8xf32>
    %108 = vector.shape_cast %107 : vector<8xf32> to vector<8x1xf32>
    %cst_29 = arith.constant 3.200000e+01 : f32
    %109 = vector.broadcast %cst_29 : f32 to vector<8x1xf32>
    %110 = arith.divf %108, %109 : vector<8x1xf32>
    %111 = arith.mulf %104, %104 : vector<8x32xf32>
    %cst_30 = arith.constant dense<0.000000e+00> : vector<8xf32>
    %112 = vector.multi_reduction <add>, %111, %cst_30 [1] : vector<8x32xf32> to vector<8xf32>
    %113 = vector.shape_cast %112 : vector<8xf32> to vector<8x1xf32>
    %cst_31 = arith.constant 3.200000e+01 : f32
    %114 = vector.broadcast %cst_31 : f32 to vector<8x1xf32>
    %115 = arith.divf %113, %114 : vector<8x1xf32>
    %116 = arith.mulf %110, %110 : vector<8x1xf32>
    %117 = arith.subf %115, %116 : vector<8x1xf32>
    %118 = vector.broadcast %110 : vector<8x1xf32> to vector<8x32xf32>
    %119 = arith.subf %104, %118 : vector<8x32xf32>
    %cst_32 = arith.constant 9.99999974E-6 : f32
    %120 = vector.broadcast %cst_32 : f32 to vector<8x1xf32>
    %121 = arith.addf %117, %120 : vector<8x1xf32>
    %122 = math.rsqrt %121 : vector<8x1xf32>
    %123 = vector.broadcast %122 : vector<8x1xf32> to vector<8x32xf32>
    %124 = arith.mulf %119, %123 : vector<8x32xf32>
    %125 = vector.broadcast %105 : vector<1x32xf32> to vector<8x32xf32>
    %126 = arith.mulf %124, %125 : vector<8x32xf32>
    %127 = vector.broadcast %106 : vector<1x32xf32> to vector<8x32xf32>
    %128 = arith.addf %126, %127 : vector<8x32xf32>
    %c0_33 = arith.constant 0 : index
    %c0_34 = arith.constant 0 : index
    %129 = vector.load %arg5[%c0_33, %c0_34] : memref<8x32xf32, #tpu.memory_space<vmem>>, vector<8x32xf32>
    tpu.vector_store %arg5[%c0_33, %c0_34], %128 {strides = array<i32>} : memref<8x32xf32, #tpu.memory_space<vmem>>, vector<8x32xf32>,
    return
  }
  func.func @transform_0(%arg0: i32, %arg1: i32) -> (i32, i32) {
    %c0_i32 = arith.constant 0 : i32
    %c0_i32_0 = arith.constant 0 : i32
    return %arg0, %c0_i32 : i32, i32
  }
  func.func @transform_1(%arg0: i32, %arg1: i32) -> (i32, i32, i32) {
    %c0_i32 = arith.constant 0 : i32
    %c0_i32_0 = arith.constant 0 : i32
    %c0_i32_1 = arith.constant 0 : i32
    return %arg0, %c0_i32, %c0_i32_0 : i32, i32, i32
  }
  func.func @transform_2(%arg0: i32, %arg1: i32) -> (i32, i32, i32) {
    %c0_i32 = arith.constant 0 : i32
    %c0_i32_0 = arith.constant 0 : i32
    %c0_i32_1 = arith.constant 0 : i32
    return %arg1, %c0_i32, %c0_i32_0 : i32, i32, i32
  }
  func.func @transform_3(%arg0: i32, %arg1: i32) -> (i32, i32) {
    %c0_i32 = arith.constant 0 : i32
    %c0_i32_0 = arith.constant 0 : i32
    return %arg0, %c0_i32 : i32, i32
  }
}

</mosaic_0001>

<llo_original>
// kernel: encoder_forward.1
$region0: #{encoder_forward.1}
  #allocation0 [shape = 'u32[]', space=smem, size = 0x4, offset = 0x4, fixed_abs, tag = 'smem constant byte address 0x4 - core index']
  #allocation1 [shape = 'u32[144,128]{1,0:T(1,128)}', space=vmem, size = 0x12000, scoped, tag = 'internal scratch']
  %s0 = inlined_call_operand.vmem [shape: f32[16,32], index: 0, kind: input, shape index: {}]
  %s1 = inlined_call_operand.vmem [shape: f32[2,1,8], index: 1, kind: input, shape index: {}]
  %s2 = inlined_call_operand.vmem [shape: f32[2,168,128], index: 2, kind: input, shape index: {}]
  %s3 = inlined_call_operand.vmem [shape: f32[16,32], index: 3, kind: output, shape index: {}]
  %s4 = sld [smem:[#allocation0]]
  $region49: #{encoder_forward.1} parent=0
    _
  %s6 = ssub.s32 1, %s4
  %s7 = scalar_select 0, %s6, %s4
  loop: start=0, step=1, limit=6
  $region2: #{encoder_forward.1} parent=0 // loop_pre_header
    _
  $region3: #{encoder_forward.1} parent=0 // loop_header
    %s9 = sphi 0, %s13
    %p10 = scmp.ge.s32.totalorder %s9, 6
    %s16 = sphi 0, %s28
    %s17 = sphi 0, %s24
    %s18 = sphi 0, %s16
    %s19 = sphi 0, %s17
    %s20 = sphi 0, %s18
    %s21 = sphi 0, %s19
    %s31 = sphi 0, %s33
    %s34 = sphi 0, %s31
    %s35 = sphi 0, %s34
    %s51 = sphi 0, %s35
    %s57 = sphi 0, %s59
    %s60 = sphi 0, %s57
    %s61 = sphi 0, %s60
    %s77 = sphi 0, %s61
    %s83 = sphi 0, %s85
    %s86 = sphi 0, %s83
    %s87 = sphi 0, %s86
    %s103 = sphi 0, %s87
    %s109 = sphi 0, %s111
    %s112 = sphi 0, %s109
    %s113 = sphi 0, %s112
    %s129 = sphi 0, %s113
  $region4: #{encoder_forward.1} parent=0 // loop_header_branch
    %12 = sbr.rel (%p10) target = $region8
  $region5: #{encoder_forward.1} parent=0 // loop_body
    %s14 = ssub.s32 %s9, 1
    %s15 = ssub.s32 %s9, 2
    %s22 = sadd.s32 1, %s17
    %p23 = scmp.ge.s32.totalorder %s22, 2
    %s24 = scalar_select %p23, 0, %s22
    %s25 = sadd.s32 1, %s16
    %s26 = scalar_select %p23, %s25, %s16
    %p27 = scmp.ge.s32.totalorder %s26, 2
    %s28 = scalar_select %p27, 0, %s26
    %s29 = ssub.s32 %s16, %s28
    %p30 = scmp.eq.s32.totalorder %s29, 0
    %s32 = sadd.s32 %s31, 1
    %s33 = scalar_select %p30, %s31, %s32
    %p36 = pneg %p30
    %p37 = scmp.eq.s32.totalorder %s9, 3
    %p38 = por %p36, %p37
    %p39 = scmp.ne.s32.totalorder %s31, %s34
    %p40 = scmp.eq.s32.totalorder %s9, 0
    %p41 = por %p39, %p40
    %p42 = scmp.ne.s32.totalorder %s31, %s34
    %p43 = scmp.eq.s32.totalorder %s14, 3
    %p44 = por %p42, %p43
    %p45 = scmp.ne.s32.totalorder %s34, %s35
    %p46 = scmp.eq.s32.totalorder %s14, 0
    %p47 = por %p45, %p46
    %p48 = scmp.ne.s32.totalorder %s34, %s35
    %p49 = scmp.eq.s32.totalorder %s15, 3
    %p50 = por %p48, %p49
    %p52 = scmp.ne.s32.totalorder %s35, %s51
    %p53 = scmp.eq.s32.totalorder %s15, 0
    %p54 = por %p52, %p53
    %s55 = ssub.s32 %s16, %s28
    %p56 = scmp.eq.s32.totalorder %s55, 0
    %s58 = sadd.s32 %s57, 1
    %s59 = scalar_select %p56, %s57, %s58
    %p62 = pneg %p56
    %p63 = scmp.eq.s32.totalorder %s9, 3
    %p64 = por %p62, %p63
    %p65 = scmp.ne.s32.totalorder %s57, %s60
    %p66 = scmp.eq.s32.totalorder %s9, 0
    %p67 = por %p65, %p66
    %p68 = scmp.ne.s32.totalorder %s57, %s60
    %p69 = scmp.eq.s32.totalorder %s14, 3
    %p70 = por %p68, %p69
    %p71 = scmp.ne.s32.totalorder %s60, %s61
    %p72 = scmp.eq.s32.totalorder %s14, 0
    %p73 = por %p71, %p72
    %p74 = scmp.ne.s32.totalorder %s60, %s61
    %p75 = scmp.eq.s32.totalorder %s15, 3
    %p76 = por %p74, %p75
    %p78 = scmp.ne.s32.totalorder %s61, %s77
    %p79 = scmp.eq.s32.totalorder %s15, 0
    %p80 = por %p78, %p79
    %s81 = ssub.s32 %s17, %s24
    %p82 = scmp.eq.s32.totalorder %s81, 0
    %s84 = sadd.s32 %s83, 1
    %s85 = scalar_select %p82, %s83, %s84
    %p88 = pneg %p82
    %p89 = scmp.eq.s32.totalorder %s9, 3
    %p90 = por %p88, %p89
    %p91 = scmp.ne.s32.totalorder %s83, %s86
    %p92 = scmp.eq.s32.totalorder %s9, 0
    %p93 = por %p91, %p92
    %p94 = scmp.ne.s32.totalorder %s83, %s86
    %p95 = scmp.eq.s32.totalorder %s14, 3
    %p96 = por %p94, %p95
    %p97 = scmp.ne.s32.totalorder %s86, %s87
    %p98 = scmp.eq.s32.totalorder %s14, 0
    %p99 = por %p97, %p98
    %p100 = scmp.ne.s32.totalorder %s86, %s87
    %p101 = scmp.eq.s32.totalorder %s15, 3
    %p102 = por %p100, %p101
    %p104 = scmp.ne.s32.totalorder %s87, %s103
    %p105 = scmp.eq.s32.totalorder %s15, 0
    %p106 = por %p104, %p105
    %s107 = ssub.s32 %s16, %s28
    %p108 = scmp.eq.s32.totalorder %s107, 0
    %s110 = sadd.s32 %s109, 1
    %s111 = scalar_select %p108, %s109, %s110
    %p114 = pneg %p108
    %p115 = scmp.eq.s32.totalorder %s9, 3
    %p116 = por %p114, %p115
    %p117 = scmp.ne.s32.totalorder %s109, %s112
    %p118 = scmp.eq.s32.totalorder %s9, 0
    %p119 = por %p117, %p118
    %p120 = scmp.ne.s32.totalorder %s109, %s112
    %p121 = scmp.eq.s32.totalorder %s14, 3
    %p122 = por %p120, %p121
    %p123 = scmp.ne.s32.totalorder %s112, %s113
    %p124 = scmp.eq.s32.totalorder %s14, 0
    %p125 = por %p123, %p124
    %p126 = scmp.ne.s32.totalorder %s112, %s113
    %p127 = scmp.eq.s32.totalorder %s15, 3
    %p128 = por %p126, %p127
    %p130 = scmp.ne.s32.totalorder %s113, %s129
    %p131 = scmp.eq.s32.totalorder %s15, 0
    %p132 = por %p130, %p131
    %p133 = scmp.le.s32.totalorder 1, %s9
    %p134 = scmp.lt.s32.totalorder %s9, 5
    %p135 = pnand %p133, %p134
    %p136 = pneg %p135
    // Predicated region
    $region9: #{encoder_forward.1} parent=5 // pred_check
      _
    $region10: #{encoder_forward.1} parent=5 // pred_check_branch
      %138 = sbr.rel (%p135) target = $region12
    $region11: #{encoder_forward.1} parent=5 // pred_region
      %s139 = ssub.s32 %s9, 1
    $region12: #{encoder_forward.1} parent=5 // pred_fallthru
      _
    %p140 = scmp.lt.s32.totalorder %s9, 4
    // Predicated region
    $region13: #{encoder_forward.1} parent=5 // pred_check
      %p141 = pneg %p140
    $region14: #{encoder_forward.1} parent=5 // pred_check_branch
      %143 = sbr.rel (%p141) target = $region16
    $region15: #{encoder_forward.1} parent=5 // pred_region
      // Predicated region
      $region17: #{encoder_forward.1} parent=15 // pred_check
        %p144 = pneg %p41
      $region18: #{encoder_forward.1} parent=15 // pred_check_branch
        %146 = sbr.rel (%p144) target = $region20
      $region19: #{encoder_forward.1} parent=15 // pred_region
        %p147 = scmp.lt.s32.totalorder %s16, 1
        %s148 = scalar_select %p147, %s16, 1
        %s149 = smul.addr %s148, 8
        %s150 = scalar_lea.vmem %s0, %s149
      $region20: #{encoder_forward.1} parent=15 // pred_fallthru
        _
      // Predicated region
      $region21: #{encoder_forward.1} parent=15 // pred_check
        %p151 = pneg %p67
      $region22: #{encoder_forward.1} parent=15 // pred_check_branch
        %153 = sbr.rel (%p151) target = $region24
      $region23: #{encoder_forward.1} parent=15 // pred_region
        %p154 = scmp.lt.s32.totalorder %s16, 1
        %s155 = scalar_select %p154, %s16, 1
        %s156 = scalar_lea.vmem %s1, %s155
      $region24: #{encoder_forward.1} parent=15 // pred_fallthru
        _
      // Predicated region
      $region25: #{encoder_forward.1} parent=15 // pred_check
        %p157 = pneg %p93
      $region26: #{encoder_forward.1} parent=15 // pred_check_branch
        %159 = sbr.rel (%p157) target = $region28
      $region27: #{encoder_forward.1} parent=15 // pred_region
        %p160 = scmp.lt.s32.totalorder %s17, 1
        %s161 = scalar_select %p160, %s17, 1
        %s162 = smul.addr %s161, 21
        %s163 = smul.addr %s162, 8
        %s164 = scalar_lea.vmem %s2, %s163
      $region28: #{encoder_forward.1} parent=15 // pred_fallthru
        _
    $region16: #{encoder_forward.1} parent=5 // pred_fallthru
      _
    %p165 = scmp.le.s32.totalorder 1, %s9
    %p166 = scmp.lt.s32.totalorder %s9, 5
    %p167 = pnand %p165, %p166
    %p168 = pneg %p167
    // Predicated region
    $region29: #{encoder_forward.1} parent=5 // pred_check
      _
    $region30: #{encoder_forward.1} parent=5 // pred_check_branch
      %170 = sbr.rel (%p167) target = $region32
    $region31: #{encoder_forward.1} parent=5 // pred_region
      %s171 = ssub.s32 %s9, 1
      %p172 = scmp.lt.s32.totalorder %s18, 1
      %s173 = scalar_select %p172, %s18, 1
      %s174 = smul.addr %s173, 8
      %s175 = scalar_lea.vmem %s0, %s174
      %p176 = pneg %p47
      %p177 = pneg %p44
      %p178 = scmp.lt.s32.totalorder %s18, 1
      %s179 = scalar_select %p178, %s18, 1
      %s180 = scalar_lea.vmem %s1, %s179
      %p181 = pneg %p73
      %p182 = pneg %p70
      %p183 = scmp.lt.s32.totalorder %s19, 1
      %s184 = scalar_select %p183, %s19, 1
      %s185 = smul.addr %s184, 21
      %s186 = smul.addr %s185, 8
      %s187 = scalar_lea.vmem %s2, %s186
      %p188 = pneg %p99
      %p189 = pneg %p96
      %p190 = pneg %p125
      %p191 = pneg %p122
      %p192 = scmp.lt.s32.totalorder %s18, 1
      %s193 = scalar_select %p192, %s18, 1
      %s194 = smul.addr %s193, 8
      %s195 = scalar_lea.vmem %s3, %s194
      %p196 = scmp.lt.s32.totalorder %s18, 1
      %s197 = scalar_select %p196, %s18, 1
      %s198 = smul.addr %s197, 8
      %s199 = scalar_lea.vmem %s0, %s198
      %p200 = scmp.lt.s32.totalorder %s18, 1
      %s201 = scalar_select %p200, %s18, 1
      %s202 = scalar_lea.vmem %s1, %s201
      %p203 = scmp.lt.s32.totalorder %s19, 1
      %s204 = scalar_select %p203, %s19, 1
      %s205 = smul.addr %s204, 21
      %s206 = smul.addr %s205, 8
      %s207 = scalar_lea.vmem %s2, %s206
      %p208 = scmp.lt.s32.totalorder %s18, 1
      %s209 = scalar_select %p208, %s18, 1
      %s210 = smul.addr %s209, 8
      %s211 = scalar_lea.vmem %s3, %s210
      %p212 = scmp.eq.s32.totalorder %s19, 0
      // Predicated region
      $region33: #{encoder_forward.1} parent=31 // pred_check
        %p213 = pneg %p212
      $region34: #{encoder_forward.1} parent=31 // pred_check_branch
        %215 = sbr.rel (%p213) target = $region36
      $region35: #{encoder_forward.1} parent=31 // pred_region
        %v216 = vld [vmem:[%s199] sm:$0xff]
        %vm217 = vcmask 261120
        %218 = vst.msk [vmem:[%s211] sm:$0xff] %vm217, %v216
      $region36: #{encoder_forward.1} parent=31 // pred_fallthru
        _
      %v219 = vld [vmem:[%s207] sm:$0xff]
      %v220 = vld [vmem:[%s207 + $0x8] sm:$0xff]
      %v221 = vld [vmem:[%s207 + $0x10] sm:$0xff]
      %v222 = vld [vmem:[%s207 + $0x18] sm:$0xff]
      %v223 = vld [vmem:[%s207 + $0x20] sm:$0xff]
      %v224 = vld [vmem:[%s207 + $0x28] sm:$0xff]
      %v225 = vld [vmem:[%s207 + $0x30] sm:$0xff]
      %v226 = vld [vmem:[%s207 + $0x38] sm:$0xff]
      %v227 = vld [vmem:[%s207 + $0x40] sm:$0xff]
      %v228 = vld [vmem:[%s207 + $0x48] sm:$0xff]
      %v229 = vld [vmem:[%s207 + $0x50] sm:$0xff]
      %v230 = vld [vmem:[%s207 + $0x58] sm:$0xff]
      %v231 = vld [vmem:[%s207 + $0x60] sm:$0xff]
      %v232 = vld [vmem:[%s207 + $0x68] sm:$0xff]
      %v233 = vld [vmem:[%s207 + $0x70] sm:$0xff]
      %v234 = vld [vmem:[%s207 + $0x78] sm:$0xff]
      %v235 = vld [vmem:[%s207 + $0x80] sm:$0xff]
      %v236 = vld [vmem:[%s207 + $0x88] sm:$0xff]
      %v237 = vld [vmem:[%s207 + $0x90] sm:$0xff]
      %v238 = vld [vmem:[%s207 + $0x98] sm:$0xff]
      %v239 = vld [vmem:[%s207 + $0xa0] sm:$0xff]
      %v240 = vld [vmem:[%s211] sm:$0xff]
      %v241 = vld [vmem:[%s202] sm:$0x1]
      %v242 = vlaneseq
      %v243 = vshrl.u32 %v242, 7
      %v244 = vsub.s32 0, %v243
      %v245 = vrot.slane %v239, %v244
      %vm246 = vcmask 261120
      %v248 = vsel %vm246, %v240, 0
      %250 = vmatprep.subr.mxu0 0.0
      %251 = vmatpush1.msra.mxu0 0.0
      %252 = vmatprep.subr.mxu0 0.0
      %253 = vmatpush1.msra.mxu0 0.0
      %254 = vmatprep.subr.mxu0 0.0
      %255 = vmatpush1.msra.mxu0 0.0
      %256 = vmatprep.subr.mxu0 0.0
      %257 = vmatpush1.msra.mxu0 0.0
      %258 = vmatprep.subr.mxu0 0.0
      %259 = vmatpush1.msra.mxu0 0.0
      %260 = vmatprep.subr.mxu0 0.0
      %261 = vmatpush1.msra.mxu0 0.0
      %262 = vmatprep.subr.mxu0 0.0
      %263 = vmatpush1.msra.mxu0 0.0
      %264 = vmatprep.subr.mxu0 0.0
      %265 = vmatpush1.msra.mxu0 0.0
      %266 = vmatprep.subr.mxu0 0.0
      %267 = vmatpush1.msra.mxu0 0.0
      %268 = vmatprep.subr.mxu0 0.0
      %269 = vmatpush1.msra.mxu0 0.0
      %270 = vmatprep.subr.mxu0 0.0
      %271 = vmatpush1.msra.mxu0 0.0
      %272 = vmatprep.subr.mxu0 0.0
      %273 = vmatpush1.msra.mxu0 0.0
      %274 = vmatprep.subr.mxu0 0.0
      %275 = vmatpush1.msra.mxu0 %v222
      %276 = vmatprep.subr.mxu0 0.0
      %277 = vmatpush1.msra.mxu0 %v221
      %278 = vmatprep.subr.mxu0 0.0
      %279 = vmatpush1.msra.mxu0 %v220
      %280 = vmatprep.subr.mxu0 0.0
      %281 = vmatpush1.msra.mxu0 %v219
      %282 = vmatprep.subr.mxu0 0.0
      %283 = vmatpush2.msra.mxu0 0.0
      %284 = vmatprep.subr.mxu0 0.0
      %285 = vmatpush2.msra.mxu0 0.0
      %286 = vmatprep.subr.mxu0 0.0
      %287 = vmatpush2.msra.mxu0 0.0
      %288 = vmatprep.subr.mxu0 0.0
      %289 = vmatpush2.msra.mxu0 0.0
      %290 = vmatprep.subr.mxu0 0.0
      %291 = vmatpush2.msra.mxu0 0.0
      %292 = vmatprep.subr.mxu0 0.0
      %293 = vmatpush2.msra.mxu0 0.0
      %294 = vmatprep.subr.mxu0 0.0
      %295 = vmatpush2.msra.mxu0 0.0
      %296 = vmatprep.subr.mxu0 0.0
      %297 = vmatpush2.msra.mxu0 0.0
      %298 = vmatprep.subr.mxu0 0.0
      %299 = vmatpush2.msra.mxu0 0.0
      %300 = vmatprep.subr.mxu0 0.0
      %301 = vmatpush2.msra.mxu0 0.0
      %302 = vmatprep.subr.mxu0 0.0
      %303 = vmatpush2.msra.mxu0 0.0
      %304 = vmatprep.subr.mxu0 0.0
      %305 = vmatpush2.msra.mxu0 0.0
      %306 = vmatprep.subr.mxu0 0.0
      %307 = vmatpush2.msra.mxu0 0.0
      %308 = vmatprep.subr.mxu0 0.0
      %309 = vmatpush2.msra.mxu0 0.0
      %310 = vmatprep.subr.mxu0 0.0
      %311 = vmatpush2.msra.mxu0 0.0
      %312 = vmatprep.subr.mxu0 0.0
      %313 = vmatpush2.msra.mxu0 0.0
      %314 = vmatprep.mubr.f32.mxu0 0.0
      %315 = vmatmul.mubr.f32.gmra.mxu0 %v248
      %v316 = vpop.f32.mrf.mxu0
      %v317 = vadd.f32 %v245, %v316
      %v318 = vpop.f32.mrf.mxu0
      %319 = vdwg.mxu0
      %v320 = vmul.f32 %v317, 0.25
      %v322 = vlaneseq
      %v323 = vshrl.u32 %v322, 7
      %v324 = vsub.s32 0, %v323
      %v325 = vrot.slane %v241, %v324
      %328 = vrot.lane.b32.xlu0 %v317, 96
      %v329 = vpop.permute.xlu0 %328
      %vm330 = vcmask 130048
      %v332 = vsel %vm330, %v320, 0
      %v334 = vsel %vm330, %v329, 0
      %336 = vmatprep.subr.mxu0 0.0
      %337 = vmatpush1.xpose.msra.mxu0 0.0
      %338 = vmatprep.subr.mxu0 0.0
      %339 = vmatpush1.xpose.msra.mxu0 0.0
      %340 = vmatprep.subr.mxu0 0.0
      %341 = vmatpush1.xpose.msra.mxu0 0.0
      %342 = vmatprep.subr.mxu0 0.0
      %343 = vmatpush1.xpose.msra.mxu0 0.0
      %344 = vmatprep.subr.mxu0 0.0
      %345 = vmatpush1.xpose.msra.mxu0 0.0
      %346 = vmatprep.subr.mxu0 0.0
      %347 = vmatpush1.xpose.msra.mxu0 0.0
      %348 = vmatprep.subr.mxu0 0.0
      %349 = vmatpush1.xpose.msra.mxu0 0.0
      %350 = vmatprep.subr.mxu0 0.0
      %351 = vmatpush1.xpose.msra.mxu0 0.0
      %352 = vmatprep.subr.mxu0 0.0
      %353 = vmatpush1.xpose.msra.mxu0 0.0
      %354 = vmatprep.subr.mxu0 0.0
      %355 = vmatpush1.xpose.msra.mxu0 0.0
      %356 = vmatprep.subr.mxu0 0.0
      %357 = vmatpush1.xpose.msra.mxu0 0.0
      %358 = vmatprep.subr.mxu0 0.0
      %359 = vmatpush1.xpose.msra.mxu0 0.0
      %360 = vmatprep.subr.mxu0 0.0
      %361 = vmatpush1.xpose.msra.mxu0 0.0
      %362 = vmatprep.subr.mxu0 0.0
      %363 = vmatpush1.xpose.msra.mxu0 0.0
      %364 = vmatprep.subr.mxu0 0.0
      %365 = vmatpush1.xpose.msra.mxu0 0.0
      %366 = vmatprep.subr.mxu0 0.0
      %367 = vmatpush1.xpose.msra.mxu0 %v334
      %368 = vmatprep.subr.mxu0 0.0
      %369 = vmatpush2.xpose.msra.mxu0 0.0
      %370 = vmatprep.subr.mxu0 0.0
      %371 = vmatpush2.xpose.msra.mxu0 0.0
      %372 = vmatprep.subr.mxu0 0.0
      %373 = vmatpush2.xpose.msra.mxu0 0.0
      %374 = vmatprep.subr.mxu0 0.0
      %375 = vmatpush2.xpose.msra.mxu0 0.0
      %376 = vmatprep.subr.mxu0 0.0
      %377 = vmatpush2.xpose.msra.mxu0 0.0
      %378 = vmatprep.subr.mxu0 0.0
      %379 = vmatpush2.xpose.msra.mxu0 0.0
      %380 = vmatprep.subr.mxu0 0.0
      %381 = vmatpush2.xpose.msra.mxu0 0.0
      %382 = vmatprep.subr.mxu0 0.0
      %383 = vmatpush2.xpose.msra.mxu0 0.0
      %384 = vmatprep.subr.mxu0 0.0
      %385 = vmatpush2.xpose.msra.mxu0 0.0
      %386 = vmatprep.subr.mxu0 0.0
      %387 = vmatpush2.xpose.msra.mxu0 0.0
      %388 = vmatprep.subr.mxu0 0.0
      %389 = vmatpush2.xpose.msra.mxu0 0.0
      %390 = vmatprep.subr.mxu0 0.0
      %391 = vmatpush2.xpose.msra.mxu0 0.0
      %392 = vmatprep.subr.mxu0 0.0
      %393 = vmatpush2.xpose.msra.mxu0 0.0
      %394 = vmatprep.subr.mxu0 0.0
      %395 = vmatpush2.xpose.msra.mxu0 0.0
      %396 = vmatprep.subr.mxu0 0.0
      %397 = vmatpush2.xpose.msra.mxu0 0.0
      %398 = vmatprep.subr.mxu0 0.0
      %399 = vmatpush2.xpose.msra.mxu0 0.0
      %400 = vmatprep.mubr.f32.mxu0 0.0
      %401 = vmatmul.mubr.f32.gmra.mxu0 %v332
      %v402 = vpop.f32.mrf.mxu0
      %v403 = vadd.f32 %v325, %v402
      %v404 = vpop.f32.mrf.mxu0
      %405 = vdwg.mxu0
      %vm406 = vcmask 64512
      %v407 = vsel %vm406, %v403, -inf
      %408 = vmax.xlane.f32.xlu0 %v407
      %v409 = vpop.xlane.xlu0 %408
      %v410 = vsub.f32 %v403, %v409
      %v411 = vmul.f32 %v410, 1.442695
      %v412 = vpow.pop %v411
      %v413 = vsel %vm406, %v412, 0.0
      %414 = vadd.xlane.f32.xlu0 %v413
      %v415 = vpop.xlane.xlu0 %414
      %v416 = vrcp.pop %v415
      %v417 = vmul.f32 %v412, %v416
      %418 = vrot.lane.b32.xlu0 %v317, 64
      %v419 = vpop.permute.xlu0 %418
      %v422 = vsel %vm406, %v417, 0
      %424 = vmatprep.subr.mxu0 0.0
      %425 = vmatpush1.msra.mxu0 0.0
      %426 = vmatprep.subr.mxu0 0.0
      %427 = vmatpush1.msra.mxu0 0.0
      %428 = vmatprep.subr.mxu0 0.0
      %429 = vmatpush1.msra.mxu0 0.0
      %430 = vmatprep.subr.mxu0 0.0
      %431 = vmatpush1.msra.mxu0 0.0
      %432 = vmatprep.subr.mxu0 0.0
      %433 = vmatpush1.msra.mxu0 0.0
      %434 = vmatprep.subr.mxu0 0.0
      %435 = vmatpush1.msra.mxu0 0.0
      %436 = vmatprep.subr.mxu0 0.0
      %437 = vmatpush1.msra.mxu0 0.0
      %438 = vmatprep.subr.mxu0 0.0
      %439 = vmatpush1.msra.mxu0 0.0
      %440 = vmatprep.subr.mxu0 0.0
      %441 = vmatpush1.msra.mxu0 0.0
      %442 = vmatprep.subr.mxu0 0.0
      %443 = vmatpush1.msra.mxu0 0.0
      %444 = vmatprep.subr.mxu0 0.0
      %445 = vmatpush1.msra.mxu0 0.0
      %446 = vmatprep.subr.mxu0 0.0
      %447 = vmatpush1.msra.mxu0 0.0
      %448 = vmatprep.subr.mxu0 0.0
      %449 = vmatpush1.msra.mxu0 0.0
      %450 = vmatprep.subr.mxu0 0.0
      %451 = vmatpush1.msra.mxu0 0.0
      %452 = vmatprep.subr.mxu0 0.0
      %453 = vmatpush1.msra.mxu0 0.0
      %454 = vmatprep.subr.mxu0 0.0
      %455 = vmatpush1.msra.mxu0 %v419
      %456 = vmatprep.subr.mxu0 0.0
      %457 = vmatpush2.msra.mxu0 0.0
      %458 = vmatprep.subr.mxu0 0.0
      %459 = vmatpush2.msra.mxu0 0.0
      %460 = vmatprep.subr.mxu0 0.0
      %461 = vmatpush2.msra.mxu0 0.0
      %462 = vmatprep.subr.mxu0 0.0
      %463 = vmatpush2.msra.mxu0 0.0
      %464 = vmatprep.subr.mxu0 0.0
      %465 = vmatpush2.msra.mxu0 0.0
      %466 = vmatprep.subr.mxu0 0.0
      %467 = vmatpush2.msra.mxu0 0.0
      %468 = vmatprep.subr.mxu0 0.0
      %469 = vmatpush2.msra.mxu0 0.0
      %470 = vmatprep.subr.mxu0 0.0
      %471 = vmatpush2.msra.mxu0 0.0
      %472 = vmatprep.subr.mxu0 0.0
      %473 = vmatpush2.msra.mxu0 0.0
      %474 = vmatprep.subr.mxu0 0.0
      %475 = vmatpush2.msra.mxu0 0.0
      %476 = vmatprep.subr.mxu0 0.0
      %477 = vmatpush2.msra.mxu0 0.0
      %478 = vmatprep.subr.mxu0 0.0
      %479 = vmatpush2.msra.mxu0 0.0
      %480 = vmatprep.subr.mxu0 0.0
      %481 = vmatpush2.msra.mxu0 0.0
      %482 = vmatprep.subr.mxu0 0.0
      %483 = vmatpush2.msra.mxu0 0.0
      %484 = vmatprep.subr.mxu0 0.0
      %485 = vmatpush2.msra.mxu0 0.0
      %486 = vmatprep.subr.mxu0 0.0
      %487 = vmatpush2.msra.mxu0 0.0
      %488 = vmatprep.mubr.f32.mxu0 0.0
      %489 = vmatmul.mubr.f32.gmra.mxu0 %v422
      %v490 = vpop.f32.mrf.mxu0
      %v491 = vadd.f32 0.0, %v490
      %v492 = vpop.f32.mrf.mxu0
      %493 = vdwg.mxu0
      %v495 = vsel %vm330, %v491, 0
      %497 = vmatprep.subr.mxu0 0.0
      %498 = vmatpush1.msra.mxu0 0.0
      %499 = vmatprep.subr.mxu0 0.0
      %500 = vmatpush1.msra.mxu0 0.0
      %501 = vmatprep.subr.mxu0 0.0
      %502 = vmatpush1.msra.mxu0 0.0
      %503 = vmatprep.subr.mxu0 0.0
      %504 = vmatpush1.msra.mxu0 0.0
      %505 = vmatprep.subr.mxu0 0.0
      %506 = vmatpush1.msra.mxu0 0.0
      %507 = vmatprep.subr.mxu0 0.0
      %508 = vmatpush1.msra.mxu0 0.0
      %509 = vmatprep.subr.mxu0 0.0
      %510 = vmatpush1.msra.mxu0 0.0
      %511 = vmatprep.subr.mxu0 0.0
      %512 = vmatpush1.msra.mxu0 0.0
      %513 = vmatprep.subr.mxu0 0.0
      %514 = vmatpush1.msra.mxu0 0.0
      %515 = vmatprep.subr.mxu0 0.0
      %516 = vmatpush1.msra.mxu0 0.0
      %517 = vmatprep.subr.mxu0 0.0
      %518 = vmatpush1.msra.mxu0 0.0
      %519 = vmatprep.subr.mxu0 0.0
      %520 = vmatpush1.msra.mxu0 0.0
      %521 = vmatprep.subr.mxu0 0.0
      %522 = vmatpush1.msra.mxu0 0.0
      %523 = vmatprep.subr.mxu0 0.0
      %524 = vmatpush1.msra.mxu0 0.0
      %525 = vmatprep.subr.mxu0 0.0
      %526 = vmatpush1.msra.mxu0 %v224
      %527 = vmatprep.subr.mxu0 0.0
      %528 = vmatpush1.msra.mxu0 %v223
      %529 = vmatprep.subr.mxu0 0.0
      %530 = vmatpush2.msra.mxu0 0.0
      %531 = vmatprep.subr.mxu0 0.0
      %532 = vmatpush2.msra.mxu0 0.0
      %533 = vmatprep.subr.mxu0 0.0
      %534 = vmatpush2.msra.mxu0 0.0
      %535 = vmatprep.subr.mxu0 0.0
      %536 = vmatpush2.msra.mxu0 0.0
      %537 = vmatprep.subr.mxu0 0.0
      %538 = vmatpush2.msra.mxu0 0.0
      %539 = vmatprep.subr.mxu0 0.0
      %540 = vmatpush2.msra.mxu0 0.0
      %541 = vmatprep.subr.mxu0 0.0
      %542 = vmatpush2.msra.mxu0 0.0
      %543 = vmatprep.subr.mxu0 0.0
      %544 = vmatpush2.msra.mxu0 0.0
      %545 = vmatprep.subr.mxu0 0.0
      %546 = vmatpush2.msra.mxu0 0.0
      %547 = vmatprep.subr.mxu0 0.0
      %548 = vmatpush2.msra.mxu0 0.0
      %549 = vmatprep.subr.mxu0 0.0
      %550 = vmatpush2.msra.mxu0 0.0
      %551 = vmatprep.subr.mxu0 0.0
      %552 = vmatpush2.msra.mxu0 0.0
      %553 = vmatprep.subr.mxu0 0.0
      %554 = vmatpush2.msra.mxu0 0.0
      %555 = vmatprep.subr.mxu0 0.0
      %556 = vmatpush2.msra.mxu0 0.0
      %557 = vmatprep.subr.mxu0 0.0
      %558 = vmatpush2.msra.mxu0 0.0
      %559 = vmatprep.subr.mxu0 0.0
      %560 = vmatpush2.msra.mxu0 0.0
      %561 = vmatprep.mubr.f32.mxu0 0.0
      %562 = vmatmul.mubr.f32.gmra.mxu0 %v495
      %v563 = vpop.f32.mrf.mxu0
      %v564 = vadd.f32 0.0, %v563
      %v565 = vpop.f32.mrf.mxu0
      %566 = vdwg.mxu0
      %v567 = vlaneseq
      %v568 = vshrl.u32 %v567, 7
      %v569 = vsub.s32 1, %v568
      %v570 = vrot.slane %v239, %v569
      %v571 = vadd.f32 %v570, %v564
      %572 = vrot.lane.b32.xlu0 %v320, 112
      %v573 = vpop.permute.xlu0 %572
      %574 = vrot.lane.b32.xlu0 %v317, 80
      %v575 = vpop.permute.xlu0 %574
      %v576 = vsel %vm330, %v573, 0
      %v578 = vsel %vm330, %v575, 0
      %580 = vmatprep.subr.mxu0 0.0
      %581 = vmatpush1.xpose.msra.mxu0 0.0
      %582 = vmatprep.subr.mxu0 0.0
      %583 = vmatpush1.xpose.msra.mxu0 0.0
      %584 = vmatprep.subr.mxu0 0.0
      %585 = vmatpush1.xpose.msra.mxu0 0.0
      %586 = vmatprep.subr.mxu0 0.0
      %587 = vmatpush1.xpose.msra.mxu0 0.0
      %588 = vmatprep.subr.mxu0 0.0
      %589 = vmatpush1.xpose.msra.mxu0 0.0
      %590 = vmatprep.subr.mxu0 0.0
      %591 = vmatpush1.xpose.msra.mxu0 0.0
      %592 = vmatprep.subr.mxu0 0.0
      %593 = vmatpush1.xpose.msra.mxu0 0.0
      %594 = vmatprep.subr.mxu0 0.0
      %595 = vmatpush1.xpose.msra.mxu0 0.0
      %596 = vmatprep.subr.mxu0 0.0
      %597 = vmatpush1.xpose.msra.mxu0 0.0
      %598 = vmatprep.subr.mxu0 0.0
      %599 = vmatpush1.xpose.msra.mxu0 0.0
      %600 = vmatprep.subr.mxu0 0.0
      %601 = vmatpush1.xpose.msra.mxu0 0.0
      %602 = vmatprep.subr.mxu0 0.0
      %603 = vmatpush1.xpose.msra.mxu0 0.0
      %604 = vmatprep.subr.mxu0 0.0
      %605 = vmatpush1.xpose.msra.mxu0 0.0
      %606 = vmatprep.subr.mxu0 0.0
      %607 = vmatpush1.xpose.msra.mxu0 0.0
      %608 = vmatprep.subr.mxu0 0.0
      %609 = vmatpush1.xpose.msra.mxu0 0.0
      %610 = vmatprep.subr.mxu0 0.0
      %611 = vmatpush1.xpose.msra.mxu0 %v578
      %612 = vmatprep.subr.mxu0 0.0
      %613 = vmatpush2.xpose.msra.mxu0 0.0
      %614 = vmatprep.subr.mxu0 0.0
      %615 = vmatpush2.xpose.msra.mxu0 0.0
      %616 = vmatprep.subr.mxu0 0.0
      %617 = vmatpush2.xpose.msra.mxu0 0.0
      %618 = vmatprep.subr.mxu0 0.0
      %619 = vmatpush2.xpose.msra.mxu0 0.0
      %620 = vmatprep.subr.mxu0 0.0
      %621 = vmatpush2.xpose.msra.mxu0 0.0
      %622 = vmatprep.subr.mxu0 0.0
      %623 = vmatpush2.xpose.msra.mxu0 0.0
      %624 = vmatprep.subr.mxu0 0.0
      %625 = vmatpush2.xpose.msra.mxu0 0.0
      %626 = vmatprep.subr.mxu0 0.0
      %627 = vmatpush2.xpose.msra.mxu0 0.0
      %628 = vmatprep.subr.mxu0 0.0
      %629 = vmatpush2.xpose.msra.mxu0 0.0
      %630 = vmatprep.subr.mxu0 0.0
      %631 = vmatpush2.xpose.msra.mxu0 0.0
      %632 = vmatprep.subr.mxu0 0.0
      %633 = vmatpush2.xpose.msra.mxu0 0.0
      %634 = vmatprep.subr.mxu0 0.0
      %635 = vmatpush2.xpose.msra.mxu0 0.0
      %636 = vmatprep.subr.mxu0 0.0
      %637 = vmatpush2.xpose.msra.mxu0 0.0
      %638 = vmatprep.subr.mxu0 0.0
      %639 = vmatpush2.xpose.msra.mxu0 0.0
      %640 = vmatprep.subr.mxu0 0.0
      %641 = vmatpush2.xpose.msra.mxu0 0.0
      %642 = vmatprep.subr.mxu0 0.0
      %643 = vmatpush2.xpose.msra.mxu0 0.0
      %644 = vmatprep.mubr.f32.mxu0 0.0
      %645 = vmatmul.mubr.f32.gmra.mxu0 %v576
      %v646 = vpop.f32.mrf.mxu0
      %v647 = vadd.f32 %v325, %v646
      %v648 = vpop.f32.mrf.mxu0
      %649 = vdwg.mxu0
      %v650 = vsel %vm406, %v647, -inf
      %651 = vmax.xlane.f32.xlu0 %v650
      %v652 = vpop.xlane.xlu0 %651
      %v653 = vsub.f32 %v647, %v652
      %v654 = vmul.f32 %v653, 1.442695
      %v655 = vpow.pop %v654
      %v656 = vsel %vm406, %v655, 0.0
      %657 = vadd.xlane.f32.xlu0 %v656
      %v658 = vpop.xlane.xlu0 %657
      %v659 = vrcp.pop %v658
      %v660 = vmul.f32 %v655, %v659
      %661 = vrot.lane.b32.xlu0 %v317, 48
      %v662 = vpop.permute.xlu0 %661
      %v665 = vsel %vm406, %v660, 0
      %667 = vmatprep.subr.mxu0 0.0
      %668 = vmatpush1.msra.mxu0 0.0
      %669 = vmatprep.subr.mxu0 0.0
      %670 = vmatpush1.msra.mxu0 0.0
      %671 = vmatprep.subr.mxu0 0.0
      %672 = vmatpush1.msra.mxu0 0.0
      %673 = vmatprep.subr.mxu0 0.0
      %674 = vmatpush1.msra.mxu0 0.0
      %675 = vmatprep.subr.mxu0 0.0
      %676 = vmatpush1.msra.mxu0 0.0
      %677 = vmatprep.subr.mxu0 0.0
      %678 = vmatpush1.msra.mxu0 0.0
      %679 = vmatprep.subr.mxu0 0.0
      %680 = vmatpush1.msra.mxu0 0.0
      %681 = vmatprep.subr.mxu0 0.0
      %682 = vmatpush1.msra.mxu0 0.0
      %683 = vmatprep.subr.mxu0 0.0
      %684 = vmatpush1.msra.mxu0 0.0
      %685 = vmatprep.subr.mxu0 0.0
      %686 = vmatpush1.msra.mxu0 0.0
      %687 = vmatprep.subr.mxu0 0.0
      %688 = vmatpush1.msra.mxu0 0.0
      %689 = vmatprep.subr.mxu0 0.0
      %690 = vmatpush1.msra.mxu0 0.0
      %691 = vmatprep.subr.mxu0 0.0
      %692 = vmatpush1.msra.mxu0 0.0
      %693 = vmatprep.subr.mxu0 0.0
      %694 = vmatpush1.msra.mxu0 0.0
      %695 = vmatprep.subr.mxu0 0.0
      %696 = vmatpush1.msra.mxu0 0.0
      %697 = vmatprep.subr.mxu0 0.0
      %698 = vmatpush1.msra.mxu0 %v662
      %699 = vmatprep.subr.mxu0 0.0
      %700 = vmatpush2.msra.mxu0 0.0
      %701 = vmatprep.subr.mxu0 0.0
      %702 = vmatpush2.msra.mxu0 0.0
      %703 = vmatprep.subr.mxu0 0.0
      %704 = vmatpush2.msra.mxu0 0.0
      %705 = vmatprep.subr.mxu0 0.0
      %706 = vmatpush2.msra.mxu0 0.0
      %707 = vmatprep.subr.mxu0 0.0
      %708 = vmatpush2.msra.mxu0 0.0
      %709 = vmatprep.subr.mxu0 0.0
      %710 = vmatpush2.msra.mxu0 0.0
      %711 = vmatprep.subr.mxu0 0.0
      %712 = vmatpush2.msra.mxu0 0.0
      %713 = vmatprep.subr.mxu0 0.0
      %714 = vmatpush2.msra.mxu0 0.0
      %715 = vmatprep.subr.mxu0 0.0
      %716 = vmatpush2.msra.mxu0 0.0
      %717 = vmatprep.subr.mxu0 0.0
      %718 = vmatpush2.msra.mxu0 0.0
      %719 = vmatprep.subr.mxu0 0.0
      %720 = vmatpush2.msra.mxu0 0.0
      %721 = vmatprep.subr.mxu0 0.0
      %722 = vmatpush2.msra.mxu0 0.0
      %723 = vmatprep.subr.mxu0 0.0
      %724 = vmatpush2.msra.mxu0 0.0
      %725 = vmatprep.subr.mxu0 0.0
      %726 = vmatpush2.msra.mxu0 0.0
      %727 = vmatprep.subr.mxu0 0.0
      %728 = vmatpush2.msra.mxu0 0.0
      %729 = vmatprep.subr.mxu0 0.0
      %730 = vmatpush2.msra.mxu0 0.0
      %731 = vmatprep.mubr.f32.mxu0 0.0
      %732 = vmatmul.mubr.f32.gmra.mxu0 %v665
      %v733 = vpop.f32.mrf.mxu0
      %v734 = vadd.f32 0.0, %v733
      %v735 = vpop.f32.mrf.mxu0
      %736 = vdwg.mxu0
      %v738 = vsel %vm330, %v734, 0
      %740 = vmatprep.subr.mxu0 0.0
      %741 = vmatpush1.msra.mxu0 0.0
      %742 = vmatprep.subr.mxu0 0.0
      %743 = vmatpush1.msra.mxu0 0.0
      %744 = vmatprep.subr.mxu0 0.0
      %745 = vmatpush1.msra.mxu0 0.0
      %746 = vmatprep.subr.mxu0 0.0
      %747 = vmatpush1.msra.mxu0 0.0
      %748 = vmatprep.subr.mxu0 0.0
      %749 = vmatpush1.msra.mxu0 0.0
      %750 = vmatprep.subr.mxu0 0.0
      %751 = vmatpush1.msra.mxu0 0.0
      %752 = vmatprep.subr.mxu0 0.0
      %753 = vmatpush1.msra.mxu0 0.0
      %754 = vmatprep.subr.mxu0 0.0
      %755 = vmatpush1.msra.mxu0 0.0
      %756 = vmatprep.subr.mxu0 0.0
      %757 = vmatpush1.msra.mxu0 0.0
      %758 = vmatprep.subr.mxu0 0.0
      %759 = vmatpush1.msra.mxu0 0.0
      %760 = vmatprep.subr.mxu0 0.0
      %761 = vmatpush1.msra.mxu0 0.0
      %762 = vmatprep.subr.mxu0 0.0
      %763 = vmatpush1.msra.mxu0 0.0
      %764 = vmatprep.subr.mxu0 0.0
      %765 = vmatpush1.msra.mxu0 0.0
      %766 = vmatprep.subr.mxu0 0.0
      %767 = vmatpush1.msra.mxu0 0.0
      %768 = vmatprep.subr.mxu0 0.0
      %769 = vmatpush1.msra.mxu0 %v226
      %770 = vmatprep.subr.mxu0 0.0
      %771 = vmatpush1.msra.mxu0 %v225
      %772 = vmatprep.subr.mxu0 0.0
      %773 = vmatpush2.msra.mxu0 0.0
      %774 = vmatprep.subr.mxu0 0.0
      %775 = vmatpush2.msra.mxu0 0.0
      %776 = vmatprep.subr.mxu0 0.0
      %777 = vmatpush2.msra.mxu0 0.0
      %778 = vmatprep.subr.mxu0 0.0
      %779 = vmatpush2.msra.mxu0 0.0
      %780 = vmatprep.subr.mxu0 0.0
      %781 = vmatpush2.msra.mxu0 0.0
      %782 = vmatprep.subr.mxu0 0.0
      %783 = vmatpush2.msra.mxu0 0.0
      %784 = vmatprep.subr.mxu0 0.0
      %785 = vmatpush2.msra.mxu0 0.0
      %786 = vmatprep.subr.mxu0 0.0
      %787 = vmatpush2.msra.mxu0 0.0
      %788 = vmatprep.subr.mxu0 0.0
      %789 = vmatpush2.msra.mxu0 0.0
      %790 = vmatprep.subr.mxu0 0.0
      %791 = vmatpush2.msra.mxu0 0.0
      %792 = vmatprep.subr.mxu0 0.0
      %793 = vmatpush2.msra.mxu0 0.0
      %794 = vmatprep.subr.mxu0 0.0
      %795 = vmatpush2.msra.mxu0 0.0
      %796 = vmatprep.subr.mxu0 0.0
      %797 = vmatpush2.msra.mxu0 0.0
      %798 = vmatprep.subr.mxu0 0.0
      %799 = vmatpush2.msra.mxu0 0.0
      %800 = vmatprep.subr.mxu0 0.0
      %801 = vmatpush2.msra.mxu0 0.0
      %802 = vmatprep.subr.mxu0 0.0
      %803 = vmatpush2.msra.mxu0 0.0
      %804 = vmatprep.mubr.f32.mxu0 0.0
      %805 = vmatmul.mubr.f32.gmra.mxu0 %v738
      %v806 = vpop.f32.mrf.mxu0
      %v807 = vadd.f32 0.0, %v806
      %v808 = vpop.f32.mrf.mxu0
      %809 = vdwg.mxu0
      %v810 = vadd.f32 %v571, %v807
      %v811 = vadd.f32 %v810, %v240
      %v812 = vsel %vm246, %v811, 0.0
      %813 = vadd.xlane.f32.xlu0 %v812
      %v814 = vpop.xlane.xlu0 %813
      %v815 = vrcp.pop 32.0
      %v816 = vmul.f32 %v814, %v815
      %v817 = vmul.f32 %v811, %v811
      %v818 = vsel %vm246, %v817, 0.0
      %819 = vadd.xlane.f32.xlu0 %v818
      %v820 = vpop.xlane.xlu0 %819
      %v821 = vmul.f32 %v820, %v815
      %v822 = vmul.f32 %v816, %v816
      %v823 = vsub.f32 %v821, %v822
      %v824 = vsub.f32 %v811, %v816
      %v825 = vadd.f32 %v823, 1e-05
      %v826 = vrsqrt.pop %v825
      %v827 = vmul.f32 %v824, %v826
      %v828 = vlaneseq
      %v829 = vshrl.u32 %v828, 7
      %v830 = vsub.s32 2, %v829
      %v831 = vrot.slane %v239, %v830
      %v832 = vmul.f32 %v827, %v831
      %v833 = vlaneseq
      %v834 = vshrl.u32 %v833, 7
      %v835 = vsub.s32 3, %v834
      %v836 = vrot.slane %v239, %v835
      %v837 = vadd.f32 %v832, %v836
      %v838 = vlaneseq
      %v839 = vshrl.u32 %v838, 7
      %v840 = vsub.s32 4, %v839
      %v841 = vrot.slane %v239, %v840
      %v843 = vsel %vm246, %v837, 0
      %845 = vmatprep.subr.mxu0 0.0
      %846 = vmatpush1.msra.mxu0 0.0
      %847 = vmatprep.subr.mxu0 0.0
      %848 = vmatpush1.msra.mxu0 0.0
      %849 = vmatprep.subr.mxu0 0.0
      %850 = vmatpush1.msra.mxu0 0.0
      %851 = vmatprep.subr.mxu0 0.0
      %852 = vmatpush1.msra.mxu0 0.0
      %853 = vmatprep.subr.mxu0 0.0
      %854 = vmatpush1.msra.mxu0 0.0
      %855 = vmatprep.subr.mxu0 0.0
      %856 = vmatpush1.msra.mxu0 0.0
      %857 = vmatprep.subr.mxu0 0.0
      %858 = vmatpush1.msra.mxu0 0.0
      %859 = vmatprep.subr.mxu0 0.0
      %860 = vmatpush1.msra.mxu0 0.0
      %861 = vmatprep.subr.mxu0 0.0
      %862 = vmatpush1.msra.mxu0 0.0
      %863 = vmatprep.subr.mxu0 0.0
      %864 = vmatpush1.msra.mxu0 0.0
      %865 = vmatprep.subr.mxu0 0.0
      %866 = vmatpush1.msra.mxu0 0.0
      %867 = vmatprep.subr.mxu0 0.0
      %868 = vmatpush1.msra.mxu0 0.0
      %869 = vmatprep.subr.mxu0 0.0
      %870 = vmatpush1.msra.mxu0 %v230
      %871 = vmatprep.subr.mxu0 0.0
      %872 = vmatpush1.msra.mxu0 %v229
      %873 = vmatprep.subr.mxu0 0.0
      %874 = vmatpush1.msra.mxu0 %v228
      %875 = vmatprep.subr.mxu0 0.0
      %876 = vmatpush1.msra.mxu0 %v227
      %877 = vmatprep.subr.mxu0 0.0
      %878 = vmatpush2.msra.mxu0 0.0
      %879 = vmatprep.subr.mxu0 0.0
      %880 = vmatpush2.msra.mxu0 0.0
      %881 = vmatprep.subr.mxu0 0.0
      %882 = vmatpush2.msra.mxu0 0.0
      %883 = vmatprep.subr.mxu0 0.0
      %884 = vmatpush2.msra.mxu0 0.0
      %885 = vmatprep.subr.mxu0 0.0
      %886 = vmatpush2.msra.mxu0 0.0
      %887 = vmatprep.subr.mxu0 0.0
      %888 = vmatpush2.msra.mxu0 0.0
      %889 = vmatprep.subr.mxu0 0.0
      %890 = vmatpush2.msra.mxu0 0.0
      %891 = vmatprep.subr.mxu0 0.0
      %892 = vmatpush2.msra.mxu0 0.0
      %893 = vmatprep.subr.mxu0 0.0
      %894 = vmatpush2.msra.mxu0 0.0
      %895 = vmatprep.subr.mxu0 0.0
      %896 = vmatpush2.msra.mxu0 0.0
      %897 = vmatprep.subr.mxu0 0.0
      %898 = vmatpush2.msra.mxu0 0.0
      %899 = vmatprep.subr.mxu0 0.0
      %900 = vmatpush2.msra.mxu0 0.0
      %901 = vmatprep.subr.mxu0 0.0
      %902 = vmatpush2.msra.mxu0 0.0
      %903 = vmatprep.subr.mxu0 0.0
      %904 = vmatpush2.msra.mxu0 0.0
      %905 = vmatprep.subr.mxu0 0.0
      %906 = vmatpush2.msra.mxu0 0.0
      %907 = vmatprep.subr.mxu0 0.0
      %908 = vmatpush2.msra.mxu0 0.0
      %909 = vmatprep.mubr.f32.mxu0 0.0
      %910 = vmatmul.mubr.f32.gmra.mxu0 %v843
      %v911 = vpop.f32.mrf.mxu0
      %v912 = vadd.f32 %v841, %v911
      %v913 = vpop.f32.mrf.mxu0
      %914 = vdwg.mxu0
      %v915 = vmax.f32 %v912, 0.0
      %v916 = vlaneseq
      %v917 = vshrl.u32 %v916, 7
      %v918 = vsub.s32 5, %v917
      %v919 = vrot.slane %v239, %v918
      %vm920 = vcmask 523264
      %v922 = vsel %vm920, %v915, 0
      %924 = vmatprep.subr.mxu0 0.0
      %925 = vmatpush1.msra.mxu0 0.0
      %926 = vmatprep.subr.mxu0 0.0
      %927 = vmatpush1.msra.mxu0 0.0
      %928 = vmatprep.subr.mxu0 0.0
      %929 = vmatpush1.msra.mxu0 0.0
      %930 = vmatprep.subr.mxu0 0.0
      %931 = vmatpush1.msra.mxu0 0.0
      %932 = vmatprep.subr.mxu0 0.0
      %933 = vmatpush1.msra.mxu0 0.0
      %934 = vmatprep.subr.mxu0 0.0
      %935 = vmatpush1.msra.mxu0 0.0
      %936 = vmatprep.subr.mxu0 0.0
      %937 = vmatpush1.msra.mxu0 0.0
      %938 = vmatprep.subr.mxu0 0.0
      %939 = vmatpush1.msra.mxu0 0.0
      %940 = vmatprep.subr.mxu0 0.0
      %941 = vmatpush1.msra.mxu0 %v238
      %942 = vmatprep.subr.mxu0 0.0
      %943 = vmatpush1.msra.mxu0 %v237
      %944 = vmatprep.subr.mxu0 0.0
      %945 = vmatpush1.msra.mxu0 %v236
      %946 = vmatprep.subr.mxu0 0.0
      %947 = vmatpush1.msra.mxu0 %v235
      %948 = vmatprep.subr.mxu0 0.0
      %949 = vmatpush1.msra.mxu0 %v234
      %950 = vmatprep.subr.mxu0 0.0
      %951 = vmatpush1.msra.mxu0 %v233
      %952 = vmatprep.subr.mxu0 0.0
      %953 = vmatpush1.msra.mxu0 %v232
      %954 = vmatprep.subr.mxu0 0.0
      %955 = vmatpush1.msra.mxu0 %v231
      %956 = vmatprep.subr.mxu0 0.0
      %957 = vmatpush2.msra.mxu0 0.0
      %958 = vmatprep.subr.mxu0 0.0
      %959 = vmatpush2.msra.mxu0 0.0
      %960 = vmatprep.subr.mxu0 0.0
      %961 = vmatpush2.msra.mxu0 0.0
      %962 = vmatprep.subr.mxu0 0.0
      %963 = vmatpush2.msra.mxu0 0.0
      %964 = vmatprep.subr.mxu0 0.0
      %965 = vmatpush2.msra.mxu0 0.0
      %966 = vmatprep.subr.mxu0 0.0
      %967 = vmatpush2.msra.mxu0 0.0
      %968 = vmatprep.subr.mxu0 0.0
      %969 = vmatpush2.msra.mxu0 0.0
      %970 = vmatprep.subr.mxu0 0.0
      %971 = vmatpush2.msra.mxu0 0.0
      %972 = vmatprep.subr.mxu0 0.0
      %973 = vmatpush2.msra.mxu0 0.0
      %974 = vmatprep.subr.mxu0 0.0
      %975 = vmatpush2.msra.mxu0 0.0
      %976 = vmatprep.subr.mxu0 0.0
      %977 = vmatpush2.msra.mxu0 0.0
      %978 = vmatprep.subr.mxu0 0.0
      %979 = vmatpush2.msra.mxu0 0.0
      %980 = vmatprep.subr.mxu0 0.0
      %981 = vmatpush2.msra.mxu0 0.0
      %982 = vmatprep.subr.mxu0 0.0
      %983 = vmatpush2.msra.mxu0 0.0
      %984 = vmatprep.subr.mxu0 0.0
      %985 = vmatpush2.msra.mxu0 0.0
      %986 = vmatprep.subr.mxu0 0.0
      %987 = vmatpush2.msra.mxu0 0.0
      %988 = vmatprep.mubr.f32.mxu0 0.0
      %989 = vmatmul.mubr.f32.gmra.mxu0 %v922
      %v990 = vpop.f32.mrf.mxu0
      %v991 = vadd.f32 %v919, %v990
      %v992 = vpop.f32.mrf.mxu0
      %993 = vdwg.mxu0
      %v994 = vadd.f32 %v991, %v837
      %v995 = vsel %vm246, %v994, 0.0
      %996 = vadd.xlane.f32.xlu0 %v995
      %v997 = vpop.xlane.xlu0 %996
      %v998 = vmul.f32 %v997, %v815
      %v999 = vmul.f32 %v994, %v994
      %v1000 = vsel %vm246, %v999, 0.0
      %1001 = vadd.xlane.f32.xlu0 %v1000
      %v1002 = vpop.xlane.xlu0 %1001
      %v1003 = vmul.f32 %v1002, %v815
      %v1004 = vmul.f32 %v998, %v998
      %v1005 = vsub.f32 %v1003, %v1004
      %v1006 = vsub.f32 %v994, %v998
      %v1007 = vadd.f32 %v1005, 1e-05
      %v1008 = vrsqrt.pop %v1007
      %v1009 = vmul.f32 %v1006, %v1008
      %v1010 = vlaneseq
      %v1011 = vshrl.u32 %v1010, 7
      %v1012 = vsub.s32 6, %v1011
      %v1013 = vrot.slane %v239, %v1012
      %v1014 = vmul.f32 %v1009, %v1013
      %v1015 = vlaneseq
      %v1016 = vshrl.u32 %v1015, 7
      %v1017 = vsub.s32 7, %v1016
      %v1018 = vrot.slane %v239, %v1017
      %v1019 = vadd.f32 %v1014, %v1018
      %1020 = vst.msk [vmem:[%s211] sm:$0xff] %vm246, %v1019
      %p1021 = scmp.lt.s32.totalorder %s18, 1
      %s1022 = scalar_select %p1021, %s18, 1
      %s1023 = smul.addr %s1022, 8
      %s1024 = scalar_lea.vmem %s3, %s1023
      // Predicated region
      $region37: #{encoder_forward.1} parent=31 // pred_check
        %p1025 = pneg %p122
      $region38: #{encoder_forward.1} parent=31 // pred_check_branch
        %1027 = sbr.rel (%p1025) target = $region40
      $region39: #{encoder_forward.1} parent=31 // pred_region
        _
      $region40: #{encoder_forward.1} parent=31 // pred_fallthru
        _
    $region32: #{encoder_forward.1} parent=5 // pred_fallthru
      _
    %p1028 = scmp.le.s32.totalorder 2, %s9
    // Predicated region
    $region41: #{encoder_forward.1} parent=5 // pred_check
      %p1029 = pneg %p1028
    $region42: #{encoder_forward.1} parent=5 // pred_check_branch
      %1031 = sbr.rel (%p1029) target = $region44
    $region43: #{encoder_forward.1} parent=5 // pred_region
      %s1032 = ssub.s32 %s9, 2
      // Predicated region
      $region45: #{encoder_forward.1} parent=43 // pred_check
        %p1033 = pneg %p128
      $region46: #{encoder_forward.1} parent=43 // pred_check_branch
        %1035 = sbr.rel (%p1033) target = $region48
      $region47: #{encoder_forward.1} parent=43 // pred_region
        %p1036 = scmp.lt.s32.totalorder %s20, 1
        %s1037 = scalar_select %p1036, %s20, 1
        %s1038 = smul.addr %s1037, 8
        %s1039 = scalar_lea.vmem %s3, %s1038
      $region48: #{encoder_forward.1} parent=43 // pred_fallthru
        _
    $region44: #{encoder_forward.1} parent=5 // pred_fallthru
      _
  $region6: #{encoder_forward.1} parent=0 // loop_footer
    %s13 = sadd.s32 1, %s9
  $region7: #{encoder_forward.1} parent=0 // loop_footer_branch
    %8 = sbr.rel target = $region3
  $region8: #{encoder_forward.1} parent=0 // loop_exit
    _

</llo_original>
